<compile_context>
chip_gen: v6e
topology: v6e:2x2x1
jax: 0.10.0
libtpu: 0.0.40
codegen_flags: <defaults>
</compile_context>

<pallas_src>
import functools

import jax
import jax.numpy as jnp
from jax.experimental import pallas as pl
from jax.experimental.pallas import tpu as pltpu

GAMMA_NEG = 4
GAMMA_POS = 1
CLIP = 0.05
EPS = 1e-8

_MiB = 1024 * 1024


def _int_pow(base, n):
    """Exact base**n for a static non-negative integer n via repeated squaring."""
    result = None
    b = base
    while n > 0:
        if n & 1:
            result = b if result is None else result * b
        b = b * b
        n >>= 1
    return jnp.ones_like(base) if result is None else result


def _asl_kernel(x_ref, y_ref, out_ref, acc_ref, *, gamma_neg, gamma_pos, clip, eps):
    i = pl.program_id(1)          # row-tile index within the chunk (arbitrary)
    j = pl.program_id(2)          # class-tile index (arbitrary)
    ni = pl.num_programs(1)
    nj = pl.num_programs(2)

    @pl.when(jnp.logical_and(i == 0, j == 0))
    def _():
        acc_ref[...] = jnp.zeros_like(acc_ref)

    x = x_ref[...].astype(jnp.float32)
    # Targets are a binarized multi-label vector; compare in native dtype
    # (int8 / bf16 / f32) so y is never widened in VMEM.
    is_pos = y_ref[...] > 0

    # sigmoid(x) = 0.5 * tanh(x / 2) + 0.5  -> a single EUP transcendental.
    xs_pos = 0.5 * jnp.tanh(0.5 * x) + 0.5
    xs_neg = 1.0 - xs_pos
    if clip is not None and clip > 0:
        xs_neg = jnp.minimum(xs_neg + clip, 1.0)

    # For binarized targets the two masked logs of the reference collapse to a
    # single log of the selected probability, and pt == p_sel.
    p_sel = jnp.where(is_pos, xs_pos, xs_neg)
    loss = jnp.log(jnp.maximum(p_sel, eps))      # second (and last) EUP push

    if gamma_neg > 0 or gamma_pos > 0:
        base = 1.0 - p_sel
        if (float(gamma_neg).is_integer() and float(gamma_pos).is_integer()
                and gamma_neg >= 0 and gamma_pos >= 0):
            # Exact integer powers on the VALU (no exp/log); matches torch.pow
            # semantics exactly, including base == 0.
            w = jnp.where(is_pos,
                          _int_pow(base, int(gamma_pos)),
                          _int_pow(base, int(gamma_neg)))
        else:
            gamma = jnp.where(is_pos, float(gamma_pos), float(gamma_neg))
            w = jnp.exp(gamma * jnp.log(jnp.maximum(base, 1e-38)))
            w = jnp.where(base <= 0.0, jnp.where(gamma == 0.0, 1.0, 0.0), w)
        loss = loss * w

    # Fold the class tile into the 128-lane accumulator with lane-aligned
    # static slices (pure VALU adds, no relayout copy); the expensive
    # cross-lane/sublane reduce runs once per chunk at the very end.
    tb, tc = loss.shape
    if tc % 128 == 0:
        for k in range(tc // 128):
            acc_ref[...] += loss[:, k * 128:(k + 1) * 128]
    else:
        acc_ref[:, 0:1] += jnp.sum(loss, axis=-1, keepdims=True)

    @pl.when(jnp.logical_and(i == ni - 1, j == nj - 1))
    def _():
        out_ref[...] = (-jnp.sum(acc_ref[...], axis=0, keepdims=True)
                        ).reshape(out_ref.shape)


def _vmem_budget():
    """Chip-aware vmem_limit_bytes: half of physical, clamped to [32, 96] MiB."""
    try:
        info = pltpu.get_tpu_info()
        phys = int(getattr(info, "vmem_capacity_bytes", 64 * _MiB))
    except Exception:
        phys = 64 * _MiB          # conservative default = v7x physical VMEM
    return min(96 * _MiB, max(32 * _MiB, phys // 2))


def _largest_divisor(n, limit, step, even_blocks=False):
    """Largest multiple-of-`step` divisor of n that is <= limit (or None)."""
    best = None
    d = step
    top = min(n, limit)
    while d <= top:
        if n % d == 0 and (not even_blocks or (n // d) % 2 == 0):
            best = d
        d += step
    return best


def asymmetric_loss(x, y, *, gamma_neg=GAMMA_NEG, gamma_pos=GAMMA_POS,
                    clip=CLIP, eps=EPS):
    """Computes -sum(ASL(x, y)).

    x: (B, C) logits, any float dtype (bf16 halves HBM traffic; math is f32).
    y: (B, C) binarized multi-label targets (values in {0, 1}); float or int8
       accepted and compared in their native dtype.
    """
    assert x.shape == y.shape and x.ndim == 2
    B, C = x.shape
    bpe = x.dtype.itemsize + y.dtype.itemsize

    vmem_limit = _vmem_budget()
    usable = vmem_limit - 2 * _MiB            # headroom for output blocks etc.

    # ---- class (lane) tiling -------------------------------------------------
    # Pad C to a multiple of 128 only when a full-C block (8 rows, double
    # buffered, plus acc rows) would overflow the VMEM budget; padded elements
    # are constructed to contribute exactly zero loss.
    pad_c = 0
    if C % 128 != 0 and (2 * 8 * C * bpe + 8 * 512) > usable:
        pad_c = (-C) % 128
    Cp = C + pad_c

    if Cp % 128 == 0:
        max_tc = min(Cp, max(128, (usable // (16 * bpe)) // 128 * 128))
        tile_c = 128
        for cand in range(max_tc, 127, -128):
            if Cp % cand == 0:
                tile_c = cand
                break
    else:
        tile_c = Cp                            # full extent (fits by construction)

    # ---- batch (sublane) tiling ----------------------------------------------
    # Per tile row: double-buffered inputs + one f32 accumulator row.
    per_row = 2 * tile_c * bpe + 128 * 4
    rows_budget = max(8, min(usable // per_row, 4096))

    pad_b = 0
    if B <= rows_budget:
        # Split into two row blocks when cheap so the parallel chunk axis can
        # use both TensorCores on v7x.
        tile_b = B // 2 if (B >= 16 and B % 16 == 0) else B
    else:
        tile_b = _largest_divisor(B, rows_budget, 8)
        if tile_b is not None and (B // tile_b) % 2 != 0:
            better = _largest_divisor(B, rows_budget, 8, even_blocks=True)
            if better is not None:
                tile_b = better
        if tile_b is None:
            # No multiple-of-8 divisor fits the budget: pad B so it tiles
            # cleanly into an even number of row blocks.
            tile_b = max(8, min((rows_budget // 8) * 8, 1024))
            pad_b = (-B) % (2 * tile_b)
    Bp = B + pad_b

    num_row_blocks = Bp // tile_b
    num_col_blocks = Cp // tile_c
    num_chunks = 2 if num_row_blocks % 2 == 0 else 1
    rows_per_chunk = num_row_blocks // num_chunks

    if pad_b or pad_c:
        # Pad with (large-negative logit, target 0): xs_neg clamps to exactly 1
        # so log(1) == 0 and (1 - pt)^gamma == 0 -> exact zero contribution.
        x = jnp.pad(x, ((0, pad_b), (0, pad_c)), constant_values=-40.0)
        y = jnp.pad(y, ((0, pad_b), (0, pad_c)), constant_values=0)

    kernel = functools.partial(
        _asl_kernel, gamma_neg=gamma_neg, gamma_pos=gamma_pos, clip=clip, eps=eps)

    in_spec = pl.BlockSpec(
        (tile_b, tile_c), lambda c, i, j: (c * rows_per_chunk + i, j))

    partials = pl.pallas_call(
        kernel,
        out_shape=jax.ShapeDtypeStruct((num_chunks, 1, 128), jnp.float32),
        grid_spec=pltpu.PrefetchScalarGridSpec(
            num_scalar_prefetch=0,
            grid=(num_chunks, rows_per_chunk, num_col_blocks),
            in_specs=[in_spec, in_spec],
            out_specs=pl.BlockSpec((1, 1, 128), lambda c, i, j: (c, 0, 0)),
            scratch_shapes=[pltpu.VMEM((tile_b, 128), jnp.float32)],
        ),
        compiler_params=pltpu.CompilerParams(
            dimension_semantics=("parallel", "arbitrary", "arbitrary"),
            vmem_limit_bytes=vmem_limit,
        ),
    )(x, y)

    # Tiny final reduction over the per-chunk lane partial sums.
    return jnp.sum(partials)


def _reference(x, y, gamma_neg=GAMMA_NEG, gamma_pos=GAMMA_POS, clip=CLIP, eps=EPS):
    xs_pos = jax.nn.sigmoid(x)
    xs_neg = 1.0 - xs_pos
    if clip is not None and clip > 0:
        xs_neg = jnp.minimum(xs_neg + clip, 1.0)
    los_pos = y * jnp.log(jnp.maximum(xs_pos, eps))
    los_neg = (1.0 - y) * jnp.log(jnp.maximum(xs_neg, eps))
    loss = los_pos + los_neg
    pt = xs_pos * y + xs_neg * (1.0 - y)
    gamma = gamma_pos * y + gamma_neg * (1.0 - y)
    loss = loss * jnp.power(1.0 - pt, gamma)
    return -jnp.sum(loss)


if __name__ == "__main__":
    # TODO(synk): disable_torch_grad_focal_loss only affects autograd; forward math is identical.
    key = jax.random.PRNGKey(0)
    kx, ky, kx2, ky2 = jax.random.split(key, 4)

    # Test 1: f32 logits, f32 binarized targets (matches the PyTorch contract).
    B, C = 16, 128
    x = jax.random.normal(kx, (B, C), dtype=jnp.float32) * 2.0
    y = (jax.random.uniform(ky, (B, C)) < 0.3).astype(jnp.float32)
    out = jax.block_until_ready(asymmetric_loss(x, y))
    ref = jax.block_until_ready(_reference(x, y))
    assert jnp.allclose(out, ref, rtol=1e-4, atol=1e-2), (out, ref)

    # Test 2: int8 targets (narrow-dtype path: compared natively in-kernel).
    B2, C2 = 64, 256
    x2 = jax.random.normal(kx2, (B2, C2), dtype=jnp.float32) * 2.0
    y2 = (jax.random.uniform(ky2, (B2, C2)) < 0.3).astype(jnp.int8)
    out2 = jax.block_until_ready(asymmetric_loss(x2, y2))
    ref2 = jax.block_until_ready(_reference(x2, y2.astype(jnp.float32)))
    assert jnp.allclose(out2, ref2, rtol=1e-4, atol=1e-2), (out2, ref2)

    print("KERNEL_OK")
</pallas_src>

<mosaic_0001>
module attributes {stable_mosaic.version = 11 : i64} {
  func.func @_asl_kernel(%arg0: i32, %arg1: i32, %arg2: i32, %arg3: memref<8x128xf32, #tpu.memory_space<vmem>>, %arg4: memref<8x128xf32, #tpu.memory_space<vmem>>, %arg5: memref<1x1x128xf32, #tpu.memory_space<vmem>>, %arg6: memref<8x128xf32, #tpu.memory_space<vmem>>) attributes {dimension_semantics = [#tpu.dimension_semantics<parallel>, #tpu.dimension_semantics<arbitrary>, #tpu.dimension_semantics<arbitrary>], iteration_bounds = array<i64: 2, 1, 1>, scalar_prefetch = 0 : i64, scratch_operands = 1 : i64, tpu.core_type = #tpu.core_type<tc>, window_params = [{transform_indices = @transform_0, window_bounds = array<i64: 8, 128>}, {transform_indices = @transform_1, window_bounds = array<i64: 8, 128>}, {transform_indices = @transform_2, window_bounds = array<i64: 1, 1, 128>}]} {
    %c0_i32 = arith.constant 0 : i32
    %0 = arith.cmpi eq, %arg1, %c0_i32 : i32
    %c0_i32_0 = arith.constant 0 : i32
    %1 = arith.cmpi eq, %arg2, %c0_i32_0 : i32
    %2 = arith.andi %0, %1 : i1
    %3 = arith.extui %2 : i1 to i32
    %c0_i32_1 = arith.constant 0 : i32
    %4 = arith.cmpi ne, %3, %c0_i32_1 : i32
    scf.if %4 {
      %cst_20 = arith.constant 0.000000e+00 : f32
      %40 = vector.broadcast %cst_20 : f32 to vector<8x128xf32>
      %c0_21 = arith.constant 0 : index
      %c0_22 = arith.constant 0 : index
      %41 = vector.load %arg6[%c0_21, %c0_22] : memref<8x128xf32, #tpu.memory_space<vmem>>, vector<8x128xf32>
      tpu.vector_store %arg6[%c0_21, %c0_22], %40 {strides = array<i32>} : memref<8x128xf32, #tpu.memory_space<vmem>>, vector<8x128xf32>,
    } else {
    }
    %c0 = arith.constant 0 : index
    %c0_2 = arith.constant 0 : index
    %5 = vector.load %arg3[%c0, %c0_2] : memref<8x128xf32, #tpu.memory_space<vmem>>, vector<8x128xf32>
    %c0_3 = arith.constant 0 : index
    %c0_4 = arith.constant 0 : index
    %6 = vector.load %arg4[%c0_3, %c0_4] : memref<8x128xf32, #tpu.memory_space<vmem>>, vector<8x128xf32>
    %cst = arith.constant 0.000000e+00 : f32
    %7 = vector.broadcast %cst : f32 to vector<8x128xf32>
    %8 = arith.cmpf ogt, %6, %7 : vector<8x128xf32>
    %cst_5 = arith.constant 5.000000e-01 : f32
    %9 = vector.broadcast %cst_5 : f32 to vector<8x128xf32>
    %10 = arith.mulf %9, %5 : vector<8x128xf32>
    %11 = math.tanh %10 : vector<8x128xf32>
    %cst_6 = arith.constant 5.000000e-01 : f32
    %12 = vector.broadcast %cst_6 : f32 to vector<8x128xf32>
    %13 = arith.mulf %12, %11 : vector<8x128xf32>
    %cst_7 = arith.constant 5.000000e-01 : f32
    %14 = vector.broadcast %cst_7 : f32 to vector<8x128xf32>
    %15 = arith.addf %13, %14 : vector<8x128xf32>
    %cst_8 = arith.constant 1.000000e+00 : f32
    %16 = vector.broadcast %cst_8 : f32 to vector<8x128xf32>
    %17 = arith.subf %16, %15 : vector<8x128xf32>
    %cst_9 = arith.constant 5.000000e-02 : f32
    %18 = vector.broadcast %cst_9 : f32 to vector<8x128xf32>
    %19 = arith.addf %17, %18 : vector<8x128xf32>
    %cst_10 = arith.constant 1.000000e+00 : f32
    %20 = vector.broadcast %cst_10 : f32 to vector<8x128xf32>
    %21 = arith.minimumf %19, %20 : vector<8x128xf32>
    %22 = arith.select %8, %15, %21 : vector<8x128xi1>, vector<8x128xf32>
    %cst_11 = arith.constant 9.99999993E-9 : f32
    %23 = vector.broadcast %cst_11 : f32 to vector<8x128xf32>
    %24 = arith.maximumf %22, %23 : vector<8x128xf32>
    %25 = math.log %24 : vector<8x128xf32>
    %cst_12 = arith.constant 1.000000e+00 : f32
    %26 = vector.broadcast %cst_12 : f32 to vector<8x128xf32>
    %27 = arith.subf %26, %22 : vector<8x128xf32>
    %28 = arith.mulf %27, %27 : vector<8x128xf32>
    %29 = arith.mulf %28, %28 : vector<8x128xf32>
    %30 = arith.select %8, %27, %29 : vector<8x128xi1>, vector<8x128xf32>
    %31 = arith.mulf %25, %30 : vector<8x128xf32>
    %c0_13 = arith.constant 0 : index
    %c0_14 = arith.constant 0 : index
    %32 = vector.load %arg6[%c0_13, %c0_14] : memref<8x128xf32, #tpu.memory_space<vmem>>, vector<8x128xf32>
    %33 = arith.addf %32, %31 : vector<8x128xf32>
    %c0_15 = arith.constant 0 : index
    %c0_16 = arith.constant 0 : index
    %34 = vector.load %arg6[%c0_15, %c0_16] : memref<8x128xf32, #tpu.memory_space<vmem>>, vector<8x128xf32>
    tpu.vector_store %arg6[%c0_15, %c0_16], %33 {strides = array<i32>} : memref<8x128xf32, #tpu.memory_space<vmem>>, vector<8x128xf32>,
    %c0_i32_17 = arith.constant 0 : i32
    %35 = arith.cmpi eq, %arg1, %c0_i32_17 : i32
    %c0_i32_18 = arith.constant 0 : i32
    %36 = arith.cmpi eq, %arg2, %c0_i32_18 : i32
    %37 = arith.andi %35, %36 : i1
    %38 = arith.extui %37 : i1 to i32
    %c0_i32_19 = arith.constant 0 : i32
    %39 = arith.cmpi ne, %38, %c0_i32_19 : i32
    scf.if %39 {
      %c0_20 = arith.constant 0 : index
      %c0_21 = arith.constant 0 : index
      %40 = vector.load %arg6[%c0_20, %c0_21] : memref<8x128xf32, #tpu.memory_space<vmem>>, vector<8x128xf32>
      %cst_22 = arith.constant dense<0.000000e+00> : vector<128xf32>
      %41 = vector.multi_reduction <add>, %40, %cst_22 [0] : vector<8x128xf32> to vector<128xf32>
      %42 = vector.shape_cast %41 : vector<128xf32> to vector<1x128xf32>
      %cst_23 = arith.constant 0.000000e+00 : f32
      %43 = vector.broadcast %cst_23 : f32 to vector<1x128xf32>
      %44 = arith.subf %43, %42 : vector<1x128xf32>
      %45 = vector.shape_cast %44 : vector<1x128xf32> to vector<1x1x128xf32>
      %c0_24 = arith.constant 0 : index
      %c0_25 = arith.constant 0 : index
      %c0_26 = arith.constant 0 : index
      %46 = vector.load %arg5[%c0_24, %c0_25, %c0_26] : memref<1x1x128xf32, #tpu.memory_space<vmem>>, vector<1x1x128xf32>
      tpu.vector_store %arg5[%c0_24, %c0_25, %c0_26], %45 {strides = array<i32>} : memref<1x1x128xf32, #tpu.memory_space<vmem>>, vector<1x1x128xf32>,
    } else {
    }
    return
  }
  func.func @transform_0(%arg0: i32, %arg1: i32, %arg2: i32) -> (i32, i32) {
    %c1_i32 = arith.constant 1 : i32
    %0 = arith.muli %arg0, %c1_i32 : i32
    %1 = arith.addi %0, %arg1 : i32
    %c0_i32 = arith.constant 0 : i32
    return %1, %arg2 : i32, i32
  }
  func.func @transform_1(%arg0: i32, %arg1: i32, %arg2: i32) -> (i32, i32) {
    %c1_i32 = arith.constant 1 : i32
    %0 = arith.muli %arg0, %c1_i32 : i32
    %1 = arith.addi %0, %arg1 : i32
    %c0_i32 = arith.constant 0 : i32
    return %1, %arg2 : i32, i32
  }
  func.func @transform_2(%arg0: i32, %arg1: i32, %arg2: i32) -> (i32, i32, i32) {
    %c0_i32 = arith.constant 0 : i32
    %c0_i32_0 = arith.constant 0 : i32
    %c0_i32_1 = arith.constant 0 : i32
    return %arg0, %c0_i32, %c0_i32_0 : i32, i32, i32
  }
}

</mosaic_0001>

<llo_original>
// kernel: tpu_custom_call.1
$region0: #{tpu_custom_call.1}
  #allocation0 [shape = 'u32[]', space=smem, size = 0x4, offset = 0x4, fixed_abs, tag = 'smem constant byte address 0x4 - core index']
  #allocation1 [shape = 'u32[144,128]{1,0:T(1,128)}', space=vmem, size = 0x12000, scoped, tag = 'internal scratch']
  #allocation2 [shape = 'f32[8,128]{1,0:T(8,128)}', space=vmem, size = 0x1000, scoped, tag = 'scratch operand']
  %s0 = inlined_call_operand.hbm [shape: f32[16,128], index: 0, kind: input, shape index: {}]
  %s1 = inlined_call_operand.hbm [shape: f32[16,128], index: 1, kind: input, shape index: {}]
  %s2 = inlined_call_operand.hbm [shape: f32[2,1,128], index: 2, kind: output, shape index: {}]
  %s3 = sld [smem:[#allocation0]]
  $region57: #{tpu_custom_call.1} parent=0
    _
  %s5 = ssub.s32 1, %s3
  %s6 = scalar_select 0, %s5, %s3
  $region1: #{tpu_custom_call.1} parent=0
    #allocation3 [shape = 'u8[8192]{0}', space=vmem, size = 0x2000, scoped, tag = 'input window, operand 0']
    #allocation4 [shape = 's32[2]{0}', space=sflag, size = 0x8, scoped, tag = 'scoped memory for tpu_custom_call.1']
    #allocation5 [shape = 's32[2]{0}', space=sflag, size = 0x8, scoped, tag = 'scoped memory for tpu_custom_call.1']
    #allocation6 [shape = 'u8[8192]{0}', space=vmem, size = 0x2000, scoped, tag = 'input window, operand 1']
    #allocation7 [shape = 's32[2]{0}', space=sflag, size = 0x8, scoped, tag = 'scoped memory for tpu_custom_call.1']
    #allocation8 [shape = 'u8[1024]{0}', space=vmem, size = 0x400, scoped, tag = 'output window, operand 0']
    %7 = vsyncpa [#allocation4], 0
    %s8 = scalar_lea.sflag [#allocation4], 1
    %9 = vsyncpa %s8, 0
    %10 = vsyncpa [#allocation7], 0
    %s11 = scalar_lea.sflag [#allocation7], 1
    %12 = vsyncpa %s11, 0
    %13 = vsyncpa [#allocation5], 0
    %s14 = scalar_lea.sflag [#allocation5], 1
    %15 = vsyncpa %s14, 0
    loop: start=0, step=1, limit=4
    $region2: #{tpu_custom_call.1} parent=1 // loop_pre_header
      _
    $region3: #{tpu_custom_call.1} parent=1 // loop_header
      %s17 = sphi 0, %s21
      %p18 = scmp.ge.s32.totalorder %s17, 4
      %s24 = sphi 0, %s43
      %s25 = sphi 0, %s39
      %s26 = sphi 0, %s35
      %s27 = sphi 0, %s24
      %s28 = sphi 0, %s25
      %s29 = sphi 0, %s26
      %s30 = sphi 0, %s27
      %s31 = sphi 0, %s28
      %s32 = sphi 0, %s29
      %s50 = sphi 0, %s52
      %s53 = sphi 0, %s50
      %s54 = sphi 0, %s53
      %s70 = sphi 0, %s54
      %s80 = sphi 0, %s82
      %s83 = sphi 0, %s80
      %s84 = sphi 0, %s83
      %s100 = sphi 0, %s84
      %s106 = sphi 0, %s108
      %s109 = sphi 0, %s106
      %s110 = sphi 0, %s109
      %s126 = sphi 0, %s110
    $region4: #{tpu_custom_call.1} parent=1 // loop_header_branch
      %20 = sbr.rel (%p18) target = $region8
    $region5: #{tpu_custom_call.1} parent=1 // loop_body
      %s22 = ssub.s32 %s17, 1
      %s23 = ssub.s32 %s17, 2
      %s33 = sadd.s32 1, %s26
      %p34 = scmp.ge.s32.totalorder %s33, 1
      %s35 = scalar_select %p34, 0, %s33
      %s36 = sadd.s32 1, %s25
      %s37 = scalar_select %p34, %s36, %s25
      %p38 = scmp.ge.s32.totalorder %s37, 1
      %s39 = scalar_select %p38, 0, %s37
      %s40 = sadd.s32 1, %s24
      %s41 = scalar_select %p38, %s40, %s24
      %p42 = scmp.ge.s32.totalorder %s41, 2
      %s43 = scalar_select %p42, 0, %s41
      %s44 = sadd.s32 %s24, %s25
      %s45 = sadd.s32 %s43, %s39
      %s46 = ssub.s32 %s44, %s45
      %s47 = ssub.s32 %s26, %s35
      %s48 = sor.u32 %s46, %s47
      %p49 = scmp.eq.s32.totalorder %s48, 0
      %s51 = sadd.s32 %s50, 1
      %s52 = scalar_select %p49, %s50, %s51
      %p55 = pneg %p49
      %p56 = scmp.eq.s32.totalorder %s17, 1
      %p57 = por %p55, %p56
      %p58 = scmp.ne.s32.totalorder %s50, %s53
      %p59 = scmp.eq.s32.totalorder %s17, 0
      %p60 = por %p58, %p59
      %p61 = scmp.ne.s32.totalorder %s50, %s53
      %p62 = scmp.eq.s32.totalorder %s22, 1
      %p63 = por %p61, %p62
      %p64 = scmp.ne.s32.totalorder %s53, %s54
      %p65 = scmp.eq.s32.totalorder %s22, 0
      %p66 = por %p64, %p65
      %p67 = scmp.ne.s32.totalorder %s53, %s54
      %p68 = scmp.eq.s32.totalorder %s23, 1
      %p69 = por %p67, %p68
      %p71 = scmp.ne.s32.totalorder %s54, %s70
      %p72 = scmp.eq.s32.totalorder %s23, 0
      %p73 = por %p71, %p72
      %s74 = sadd.s32 %s24, %s25
      %s75 = sadd.s32 %s43, %s39
      %s76 = ssub.s32 %s74, %s75
      %s77 = ssub.s32 %s26, %s35
      %s78 = sor.u32 %s76, %s77
      %p79 = scmp.eq.s32.totalorder %s78, 0
      %s81 = sadd.s32 %s80, 1
      %s82 = scalar_select %p79, %s80, %s81
      %p85 = pneg %p79
      %p86 = scmp.eq.s32.totalorder %s17, 1
      %p87 = por %p85, %p86
      %p88 = scmp.ne.s32.totalorder %s80, %s83
      %p89 = scmp.eq.s32.totalorder %s17, 0
      %p90 = por %p88, %p89
      %p91 = scmp.ne.s32.totalorder %s80, %s83
      %p92 = scmp.eq.s32.totalorder %s22, 1
      %p93 = por %p91, %p92
      %p94 = scmp.ne.s32.totalorder %s83, %s84
      %p95 = scmp.eq.s32.totalorder %s22, 0
      %p96 = por %p94, %p95
      %p97 = scmp.ne.s32.totalorder %s83, %s84
      %p98 = scmp.eq.s32.totalorder %s23, 1
      %p99 = por %p97, %p98
      %p101 = scmp.ne.s32.totalorder %s84, %s100
      %p102 = scmp.eq.s32.totalorder %s23, 0
      %p103 = por %p101, %p102
      %s104 = ssub.s32 %s24, %s43
      %p105 = scmp.eq.s32.totalorder %s104, 0
      %s107 = sadd.s32 %s106, 1
      %s108 = scalar_select %p105, %s106, %s107
      %p111 = pneg %p105
      %p112 = scmp.eq.s32.totalorder %s17, 1
      %p113 = por %p111, %p112
      %p114 = scmp.ne.s32.totalorder %s106, %s109
      %p115 = scmp.eq.s32.totalorder %s17, 0
      %p116 = por %p114, %p115
      %p117 = scmp.ne.s32.totalorder %s106, %s109
      %p118 = scmp.eq.s32.totalorder %s22, 1
      %p119 = por %p117, %p118
      %p120 = scmp.ne.s32.totalorder %s109, %s110
      %p121 = scmp.eq.s32.totalorder %s22, 0
      %p122 = por %p120, %p121
      %p123 = scmp.ne.s32.totalorder %s109, %s110
      %p124 = scmp.eq.s32.totalorder %s23, 1
      %p125 = por %p123, %p124
      %p127 = scmp.ne.s32.totalorder %s110, %s126
      %p128 = scmp.eq.s32.totalorder %s23, 0
      %p129 = por %p127, %p128
      %p130 = scmp.le.s32.totalorder 1, %s17
      %p131 = scmp.lt.s32.totalorder %s17, 3
      %p132 = pnand %p130, %p131
      %p133 = pneg %p132
      // Predicated region
      $region9: #{tpu_custom_call.1} parent=5 // pred_check
        _
      $region10: #{tpu_custom_call.1} parent=5 // pred_check_branch
        %135 = sbr.rel (%p132) target = $region12
      $region11: #{tpu_custom_call.1} parent=5 // pred_region
        %s136 = ssub.s32 %s17, 1
      $region12: #{tpu_custom_call.1} parent=5 // pred_fallthru
        _
      %p137 = scmp.lt.s32.totalorder %s17, 2
      // Predicated region
      $region13: #{tpu_custom_call.1} parent=5 // pred_check
        %p138 = pneg %p137
      $region14: #{tpu_custom_call.1} parent=5 // pred_check_branch
        %140 = sbr.rel (%p138) target = $region16
      $region15: #{tpu_custom_call.1} parent=5 // pred_region
        // Predicated region
        $region17: #{tpu_custom_call.1} parent=15 // pred_check
          %p141 = pneg %p60
        $region18: #{tpu_custom_call.1} parent=15 // pred_check_branch
          %143 = sbr.rel (%p141) target = $region20
        $region19: #{tpu_custom_call.1} parent=15 // pred_region
          %s144 = sand.u32 %s50, 1
          %s145 = scalar_lea.sflag [#allocation4], %s144
          %s146 = sand.u32 %s50, 1
          %s147 = smul.addr %s146, 8
          %s148 = scalar_lea.vmem [#allocation3], %s147
          %s149 = sadd.s32 %s24, %s25
          %s151 = ssub.s32 128, 128
          %152 = vsyncadd %s145, %s151
          %s153 = sadd.s32 %s26, %s149
          %s154 = smul.addr %s153, 128
          %s155 = scalar_lea.hbm %s0, %s154
          %s157 = sshll.u32 %s148, 4
          %s158 = int_to_ptr.vmem [resolvable:$true] %s157
          %160 = dma.hbm_to_vmem [thread:$0]  %s155, 128, %s158, %s145
        $region20: #{tpu_custom_call.1} parent=15 // pred_fallthru
          _
        // Predicated region
        $region21: #{tpu_custom_call.1} parent=15 // pred_check
          %p161 = pneg %p90
        $region22: #{tpu_custom_call.1} parent=15 // pred_check_branch
          %163 = sbr.rel (%p161) target = $region24
        $region23: #{tpu_custom_call.1} parent=15 // pred_region
          %s164 = sand.u32 %s80, 1
          %s165 = scalar_lea.sflag [#allocation7], %s164
          %s166 = sand.u32 %s80, 1
          %s167 = smul.addr %s166, 8
          %s168 = scalar_lea.vmem [#allocation6], %s167
          %s169 = sadd.s32 %s24, %s25
          %s171 = ssub.s32 128, 128
          %172 = vsyncadd %s165, %s171
          %s173 = sadd.s32 %s26, %s169
          %s174 = smul.addr %s173, 128
          %s175 = scalar_lea.hbm %s1, %s174
          %s177 = sshll.u32 %s168, 4
          %s178 = int_to_ptr.vmem [resolvable:$true] %s177
          %180 = dma.hbm_to_vmem [thread:$0]  %s175, 128, %s178, %s165
        $region24: #{tpu_custom_call.1} parent=15 // pred_fallthru
          _
      $region16: #{tpu_custom_call.1} parent=5 // pred_fallthru
        _
      %p181 = scmp.le.s32.totalorder 1, %s17
      %p182 = scmp.lt.s32.totalorder %s17, 3
      %p183 = pnand %p181, %p182
      %p184 = pneg %p183
      // Predicated region
      $region25: #{tpu_custom_call.1} parent=5 // pred_check
        _
      $region26: #{tpu_custom_call.1} parent=5 // pred_check_branch
        %186 = sbr.rel (%p183) target = $region28
      $region27: #{tpu_custom_call.1} parent=5 // pred_region
        %s187 = ssub.s32 %s17, 1
        %s188 = sand.u32 %s53, 1
        %s189 = scalar_lea.sflag [#allocation4], %s188
        %s190 = sand.u32 %s53, 1
        %s191 = smul.addr %s190, 8
        %s192 = scalar_lea.vmem [#allocation3], %s191
        // Predicated region
        $region29: #{tpu_custom_call.1} parent=27 // pred_check
          %p193 = pneg %p66
        $region30: #{tpu_custom_call.1} parent=27 // pred_check_branch
          %195 = sbr.rel (%p193) target = $region32
        $region31: #{tpu_custom_call.1} parent=27 // pred_region
          %196 = dma.done %s189, 128
        $region32: #{tpu_custom_call.1} parent=27 // pred_fallthru
          _
        %s197 = sand.u32 %s83, 1
        %s198 = scalar_lea.sflag [#allocation7], %s197
        %s199 = sand.u32 %s83, 1
        %s200 = smul.addr %s199, 8
        %s201 = scalar_lea.vmem [#allocation6], %s200
        // Predicated region
        $region33: #{tpu_custom_call.1} parent=27 // pred_check
          %p202 = pneg %p96
        $region34: #{tpu_custom_call.1} parent=27 // pred_check_branch
          %204 = sbr.rel (%p202) target = $region36
        $region35: #{tpu_custom_call.1} parent=27 // pred_region
          %205 = dma.done %s198, 128
        $region36: #{tpu_custom_call.1} parent=27 // pred_fallthru
          _
        %s206 = sand.u32 %s53, 1
        %s207 = scalar_lea.sflag [#allocation4], %s206
        %s208 = sand.u32 %s53, 1
        %s209 = smul.addr %s208, 8
        %s210 = scalar_lea.vmem [#allocation3], %s209
        %p211 = pneg %p66
        %p212 = pneg %p63
        %s213 = sand.u32 %s83, 1
        %s214 = scalar_lea.sflag [#allocation7], %s213
        %s215 = sand.u32 %s83, 1
        %s216 = smul.addr %s215, 8
        %s217 = scalar_lea.vmem [#allocation6], %s216
        %p218 = pneg %p96
        %p219 = pneg %p93
        %p220 = pneg %p122
        %p221 = pneg %p119
        %s222 = sand.u32 %s109, 1
        %s223 = scalar_lea.sflag [#allocation5], %s222
        %s224 = sand.u32 %s109, 1
        %s225 = scalar_lea.vmem [#allocation8], %s224
        %s226 = sadd.s32 %s27, %s28
        %s227 = sadd.s32 %s27, %s28
        %p228 = scmp.eq.s32.totalorder %s28, 0
        %p229 = scmp.eq.s32.totalorder %s29, 0
        %p230 = pnand %p228, %p229
        %p231 = pneg %p230
        // Predicated region
        $region37: #{tpu_custom_call.1} parent=27 // pred_check
          _
        $region38: #{tpu_custom_call.1} parent=27 // pred_check_branch
          %233 = sbr.rel (%p230) target = $region40
        $region39: #{tpu_custom_call.1} parent=27 // pred_region
          %234 = vst [vmem:[#allocation2] sm:$0xff] 0.0
        $region40: #{tpu_custom_call.1} parent=27 // pred_fallthru
          _
        %v235 = vld [vmem:[%s192] sm:$0xff]
        %v236 = vld [vmem:[%s201] sm:$0xff]
        %vm237 = vcmp.gt.f32.partialorder %v236, 0.0
        %v238 = vmul.f32 %v235, 0.5
        %v239 = vtanh.pop %v238
        %v240 = vmul.f32 %v239, 0.5
        %v241 = vadd.f32 %v240, 0.5
        %v242 = vsub.f32 1.0, %v241
        %v243 = vadd.f32 %v242, 0.05
        %v244 = vmin.f32 %v243, 1.0
        %v245 = vsel %vm237, %v241, %v244
        %v246 = vmax.f32 %v245, 1e-08
        %v247 = vlog2.pop %v246
        %v248 = vmul.f32 %v247, 0.6931472
        %v249 = vsub.f32 1.0, %v245
        %v250 = vmul.f32 %v249, %v249
        %v251 = vmul.f32 %v250, %v250
        %v252 = vsel %vm237, %v249, %v251
        %v253 = vmul.f32 %v248, %v252
        %v254 = vld [vmem:[#allocation2] sm:$0xff]
        %v255 = vadd.f32 %v254, %v253
        %256 = vst [vmem:[#allocation2] sm:$0xff] %v255
        // Predicated region
        $region41: #{tpu_custom_call.1} parent=27 // pred_check
          _
        $region42: #{tpu_custom_call.1} parent=27 // pred_check_branch
          %258 = sbr.rel (%p230) target = $region44
        $region43: #{tpu_custom_call.1} parent=27 // pred_region
          %v259 = vld [vmem:[#allocation2] sm:$0xff]
          %v260 = vrot.slane %v259, 4
          %v261 = vadd.f32 %v259, %v260
          %v262 = vrot.slane %v261, 2
          %v263 = vadd.f32 %v261, %v262
          %v264 = vrot.slane %v263, 1
          %v265 = vadd.f32 %v263, %v264
          %v266 = vsub.f32 0.0, %v265
          %267 = vst [vmem:[%s225] sm:$0x1] %v266
        $region44: #{tpu_custom_call.1} parent=27 // pred_fallthru
          _
        %s268 = sand.u32 %s109, 1
        %s269 = scalar_lea.sflag [#allocation5], %s268
        %s270 = sand.u32 %s109, 1
        %s271 = scalar_lea.vmem [#allocation8], %s270
        // Predicated region
        $region45: #{tpu_custom_call.1} parent=27 // pred_check
          %p272 = pneg %p119
        $region46: #{tpu_custom_call.1} parent=27 // pred_check_branch
          %274 = sbr.rel (%p272) target = $region48
        $region47: #{tpu_custom_call.1} parent=27 // pred_region
          %s276 = ssub.s32 16, 16
          %277 = vsyncadd %s269, %s276
          %s278 = smul.addr %s27, 16
          %s279 = scalar_lea.hbm %s2, %s278
          %s281 = sshll.u32 %s271, 4
          %s282 = int_to_ptr.vmem [resolvable:$true] %s281
          %284 = dma.vmem_to_hbm [thread:$0]  %s282, 16, %s279, %s269
        $region48: #{tpu_custom_call.1} parent=27 // pred_fallthru
          _
      $region28: #{tpu_custom_call.1} parent=5 // pred_fallthru
        _
      %p285 = scmp.le.s32.totalorder 2, %s17
      // Predicated region
      $region49: #{tpu_custom_call.1} parent=5 // pred_check
        %p286 = pneg %p285
      $region50: #{tpu_custom_call.1} parent=5 // pred_check_branch
        %288 = sbr.rel (%p286) target = $region52
      $region51: #{tpu_custom_call.1} parent=5 // pred_region
        %s289 = ssub.s32 %s17, 2
        // Predicated region
        $region53: #{tpu_custom_call.1} parent=51 // pred_check
          %p290 = pneg %p125
        $region54: #{tpu_custom_call.1} parent=51 // pred_check_branch
          %292 = sbr.rel (%p290) target = $region56
        $region55: #{tpu_custom_call.1} parent=51 // pred_region
          %s293 = sand.u32 %s110, 1
          %s294 = scalar_lea.sflag [#allocation5], %s293
          %s295 = sand.u32 %s110, 1
          %s296 = scalar_lea.vmem [#allocation8], %s295
          %297 = dma.done %s294, 16
        $region56: #{tpu_custom_call.1} parent=51 // pred_fallthru
          _
      $region52: #{tpu_custom_call.1} parent=5 // pred_fallthru
        _
    $region6: #{tpu_custom_call.1} parent=1 // loop_footer
      %s21 = sadd.s32 1, %s17
    $region7: #{tpu_custom_call.1} parent=1 // loop_footer_branch
      %16 = sbr.rel target = $region3
    $region8: #{tpu_custom_call.1} parent=1 // loop_exit
      _
    %298 = vsyncpa [#allocation4], 1
    %s299 = scalar_lea.sflag [#allocation4], 1
    %300 = vsyncpa %s299, 1
    %301 = vsyncpa [#allocation7], 1
    %s302 = scalar_lea.sflag [#allocation7], 1
    %303 = vsyncpa %s302, 1
    %304 = vsyncpa [#allocation5], 1
    %s305 = scalar_lea.sflag [#allocation5], 1
    %306 = vsyncpa %s305, 1

</llo_original>
